<compile_context>
chip_gen: v5e
topology: v5e:2x2
jax: 0.10.0
libtpu: 0.0.40
codegen_flags: <defaults>
</compile_context>

<pallas_src>
import jax
import jax.numpy as jnp
from jax.experimental import pallas as pl
from jax.experimental.pallas import tpu as pltpu


def _round_up(v, m):
    return ((v + m - 1) // m) * m


def nll_multilabel_smooth(x, target, smoothing=0.1, tb=None,
                          vmem_limit_bytes=None):
    """Pallas TPU implementation of NLLMultiLabelSmooth.forward (training mode).

    x:      (N, C) logits (any float dtype; math is done in float32)
    target: (N, C) (multi-)label weights
    Returns a scalar float32 loss.
    """
    N, C = x.shape
    assert target.shape == (N, C)
    confidence = 1.0 - smoothing
    smooth_over_c = smoothing / float(C)
    inv_n = 1.0 / float(N)

    # ---- per-generation scoped-VMEM limit -----------------------------------
    if vmem_limit_bytes is None:
        try:
            vmem_cap = pltpu.get_tpu_info().vmem_capacity_bytes
        except Exception:
            vmem_cap = 64 * 1024 * 1024          # conservative (v7x-sized) fallback
        # ~60% of physical per-core VMEM leaves headroom for compiler-internal
        # scratch: ~77 MiB on v5e/v6e (128 MiB), ~38 MiB on v7x (64 MiB).
        vmem_limit_bytes = min(int(0.6 * vmem_cap), 96 * 1024 * 1024)

    # ---- dtype-aware batch tile ----------------------------------------------
    # Real per-row working set:
    #   pipeline buffers : 2 (double-buffer) x (x block + target block) at
    #                      their native itemsize,
    #   f32 temporaries  : ~4 materialized (tb, C) f32 arrays inside the kernel
    #                      (casts, fused weight, shifted/logprobs).
    x_isize = jnp.dtype(x.dtype).itemsize
    t_isize = jnp.dtype(target.dtype).itemsize
    n_f32_tmp = 4
    per_row_bytes = C * (2 * (x_isize + t_isize) + n_f32_tmp * 4)

    if tb is None:
        budget = int(0.75 * vmem_limit_bytes)      # keep slack under the limit
        tb = max(8, (budget // per_row_bytes) // 8 * 8)
        tb = min(tb, 8192)
    else:
        tb = max(8, (int(tb) // 8) * 8)
    # Never allocate a tile larger than the (8-rounded) batch itself.
    tb = min(tb, _round_up(N, 8))

    grid_n = pl.cdiv(N, tb)
    # Ragged last block -> out-of-bounds rows hold undefined data; mask them.
    needs_mask = (grid_n * tb != N)

    # ---- kernel --------------------------------------------------------------
    def kernel(x_ref, t_ref, out_ref):
        xf = x_ref[...].astype(jnp.float32)     # (tb, C)
        tf = t_ref[...].astype(jnp.float32)     # (tb, C)

        # Fused weighting:
        #   confidence * (-sum(lp*t)) + smoothing * mean(-lp)
        # = -sum(lp * (confidence*t + smoothing/C))
        w = confidence * tf + smooth_over_c     # (tb, C), one VPU FMA

        # Numerically stable log_softmax along the class (lane) axis.
        m = jnp.max(xf, axis=-1, keepdims=True)             # XLU reduce 1
        shifted = xf - m
        lse = jnp.log(jnp.sum(jnp.exp(shifted), axis=-1,    # XLU reduce 2
                              keepdims=True))
        logprobs = shifted - lse                             # (tb, C)

        loss_rows = -jnp.sum(logprobs * w, axis=-1,          # XLU reduce 3
                             keepdims=True)                  # (tb, 1)

        if needs_mask:  # static: only emitted when the last block is ragged
            i = pl.program_id(0)
            row = jax.lax.broadcasted_iota(jnp.int32, (tb, 1), 0) + i * tb
            # Select (not multiply): garbage rows may be NaN/Inf.
            loss_rows = jnp.where(row < N, loss_rows, 0.0)

        p = jnp.sum(loss_rows)                               # block partial sum
        # Lane/sublane-dense (8,128) tile; distinct output block per grid step
        # -> safe to mark the grid axis "parallel".
        out_ref[...] = jnp.full((1, 8, 128), p, dtype=jnp.float32)

    partials = pl.pallas_call(
        kernel,
        out_shape=jax.ShapeDtypeStruct((grid_n, 8, 128), jnp.float32),
        grid_spec=pltpu.PrefetchScalarGridSpec(
            num_scalar_prefetch=0,
            grid=(grid_n,),
            in_specs=[
                pl.BlockSpec((tb, C), lambda i: (i, 0)),
                pl.BlockSpec((tb, C), lambda i: (i, 0)),
            ],
            out_specs=pl.BlockSpec((1, 8, 128), lambda i: (i, 0, 0)),
        ),
        compiler_params=pltpu.CompilerParams(
            dimension_semantics=("parallel",),
            vmem_limit_bytes=vmem_limit_bytes),
    )(x, target)

    # Tiny final reduction over per-block partials, then the 1/N mean.
    return jnp.sum(partials[:, 0, 0]) * inv_n


def _reference(x, target, smoothing=0.1):
    confidence = 1.0 - smoothing
    xf = x.astype(jnp.float32)
    tf = target.astype(jnp.float32)
    logprobs = jax.nn.log_softmax(xf, axis=-1)
    nll = jnp.sum(-logprobs * tf, axis=-1)
    smooth = jnp.mean(-logprobs, axis=-1)
    return jnp.mean(confidence * nll + smoothing * smooth)


if __name__ == "__main__":
    # Module has no learnable parameters; only the smoothing hyperparameter.
    smoothing = 0.1
    N, C = 16, 32

    key = jax.random.PRNGKey(0)
    kx, kt = jax.random.split(key)
    x = jax.random.normal(kx, (N, C), dtype=jnp.float32)
    # Multi-hot targets (the module supports arbitrary soft/multi labels).
    target = (jax.random.uniform(kt, (N, C)) < 0.2).astype(jnp.float32)

    loss = nll_multilabel_smooth(x, target, smoothing=smoothing)
    loss = jax.block_until_ready(loss)
    ref = _reference(x, target, smoothing=smoothing)
    assert jnp.allclose(loss, ref, atol=1e-5, rtol=1e-5), (loss, ref)

    # Also exercise a ragged (N % tb != 0) case to cover the in-kernel mask
    # path that replaced the wrapper-side padding.
    N2, C2 = 19, 40
    k2x, k2t = jax.random.split(jax.random.PRNGKey(0), 2)
    x2 = jax.random.normal(k2x, (N2, C2), dtype=jnp.bfloat16)
    t2 = (jax.random.uniform(k2t, (N2, C2)) < 0.3).astype(jnp.float32)
    loss2 = jax.block_until_ready(
        nll_multilabel_smooth(x2, t2, smoothing=smoothing, tb=8))
    ref2 = _reference(x2, t2, smoothing=smoothing)
    assert jnp.allclose(loss2, ref2, atol=2e-2, rtol=2e-2), (loss2, ref2)

    print("KERNEL_OK")
</pallas_src>

<mosaic_0001>
module attributes {stable_mosaic.version = 11 : i64} {
  func.func @kernel(%arg0: i32, %arg1: memref<16x32xf32, #tpu.memory_space<vmem>>, %arg2: memref<16x32xf32, #tpu.memory_space<vmem>>, %arg3: memref<1x8x128xf32, #tpu.memory_space<vmem>>) attributes {dimension_semantics = [#tpu.dimension_semantics<parallel>], iteration_bounds = array<i64: 1>, scalar_prefetch = 0 : i64, scratch_operands = 0 : i64, tpu.core_type = #tpu.core_type<tc>, window_params = [{transform_indices = @transform_0, window_bounds = array<i64: 16, 32>}, {transform_indices = @transform_1, window_bounds = array<i64: 16, 32>}, {transform_indices = @transform_2, window_bounds = array<i64: 1, 8, 128>}]} {
    %c0 = arith.constant 0 : index
    %c0_0 = arith.constant 0 : index
    %0 = vector.load %arg1[%c0, %c0_0] : memref<16x32xf32, #tpu.memory_space<vmem>>, vector<16x32xf32>
    %c0_1 = arith.constant 0 : index
    %c0_2 = arith.constant 0 : index
    %1 = vector.load %arg2[%c0_1, %c0_2] : memref<16x32xf32, #tpu.memory_space<vmem>>, vector<16x32xf32>
    %cst = arith.constant 0.899999976 : f32
    %2 = vector.broadcast %cst : f32 to vector<16x32xf32>
    %3 = arith.mulf %2, %1 : vector<16x32xf32>
    %cst_3 = arith.constant 3.125000e-03 : f32
    %4 = vector.broadcast %cst_3 : f32 to vector<16x32xf32>
    %5 = arith.addf %3, %4 : vector<16x32xf32>
    %cst_4 = arith.constant dense<0xFF800000> : vector<16xf32>
    %6 = vector.multi_reduction <maximumf>, %0, %cst_4 [1] : vector<16x32xf32> to vector<16xf32>
    %7 = vector.shape_cast %6 : vector<16xf32> to vector<16x1xf32>
    %8 = vector.broadcast %7 : vector<16x1xf32> to vector<16x32xf32>
    %9 = arith.subf %0, %8 : vector<16x32xf32>
    %10 = math.exp %9 : vector<16x32xf32>
    %cst_5 = arith.constant dense<0.000000e+00> : vector<16xf32>
    %11 = vector.multi_reduction <add>, %10, %cst_5 [1] : vector<16x32xf32> to vector<16xf32>
    %12 = vector.shape_cast %11 : vector<16xf32> to vector<16x1xf32>
    %13 = math.log %12 : vector<16x1xf32>
    %14 = vector.broadcast %13 : vector<16x1xf32> to vector<16x32xf32>
    %15 = arith.subf %9, %14 : vector<16x32xf32>
    %16 = arith.mulf %15, %5 : vector<16x32xf32>
    %cst_6 = arith.constant dense<0.000000e+00> : vector<16xf32>
    %17 = vector.multi_reduction <add>, %16, %cst_6 [1] : vector<16x32xf32> to vector<16xf32>
    %18 = vector.shape_cast %17 : vector<16xf32> to vector<16x1xf32>
    %cst_7 = arith.constant 0.000000e+00 : f32
    %19 = vector.broadcast %cst_7 : f32 to vector<16x1xf32>
    %20 = arith.subf %19, %18 : vector<16x1xf32>
    %21 = vector.shape_cast %20 : vector<16x1xf32> to vector<1x16x1xf32>
    %cst_8 = arith.constant dense<0.000000e+00> : vector<1xf32>
    %22 = vector.multi_reduction <add>, %21, %cst_8 [1, 2] : vector<1x16x1xf32> to vector<1xf32>
    %23 = vector.shape_cast %22 : vector<1xf32> to vector<1x1x1xf32>
    %24 = vector.extract %23[0, 0, 0] : f32 from vector<1x1x1xf32>
    %25 = vector.broadcast %24 : f32 to vector<1x8x128xf32>
    %c0_9 = arith.constant 0 : index
    %c0_10 = arith.constant 0 : index
    %c0_11 = arith.constant 0 : index
    %26 = vector.load %arg3[%c0_9, %c0_10, %c0_11] : memref<1x8x128xf32, #tpu.memory_space<vmem>>, vector<1x8x128xf32>
    tpu.vector_store %arg3[%c0_9, %c0_10, %c0_11], %25 {strides = array<i32>} : memref<1x8x128xf32, #tpu.memory_space<vmem>>, vector<1x8x128xf32>,
    return
  }
  func.func @transform_0(%arg0: i32) -> (i32, i32) {
    %c0_i32 = arith.constant 0 : i32
    %c0_i32_0 = arith.constant 0 : i32
    return %arg0, %c0_i32 : i32, i32
  }
  func.func @transform_1(%arg0: i32) -> (i32, i32) {
    %c0_i32 = arith.constant 0 : i32
    %c0_i32_0 = arith.constant 0 : i32
    return %arg0, %c0_i32 : i32, i32
  }
  func.func @transform_2(%arg0: i32) -> (i32, i32, i32) {
    %c0_i32 = arith.constant 0 : i32
    %c0_i32_0 = arith.constant 0 : i32
    %c0_i32_1 = arith.constant 0 : i32
    return %arg0, %c0_i32, %c0_i32_0 : i32, i32, i32
  }
}

</mosaic_0001>

<llo_original>
// kernel: tpu_custom_call.1
$region0: #{tpu_custom_call.1}
  #allocation0 [shape = 'u32[]', space=smem, size = 0x4, offset = 0x4, fixed_abs, tag = 'smem constant byte address 0x4 - core index']
  #allocation1 [shape = 'u32[72,128]{1,0:T(1,128)}', space=vmem, size = 0x9000, scoped, tag = 'internal scratch']
  %s0 = inlined_call_operand.hbm [shape: f32[16,32], index: 0, kind: input, shape index: {}]
  %s1 = inlined_call_operand.hbm [shape: f32[16,32], index: 1, kind: input, shape index: {}]
  %s2 = inlined_call_operand.hbm [shape: f32[1,8,128], index: 2, kind: output, shape index: {}]
  %s3 = sld [smem:[#allocation0]]
  $region26: #{tpu_custom_call.1} parent=0
    _
  %s5 = ssub.s32 1, %s3
  %s6 = scalar_select 0, %s5, %s3
  $region1: #{tpu_custom_call.1} parent=0
    #allocation2 [shape = 'u8[8192]{0}', space=vmem, size = 0x2000, scoped, tag = 'input window, operand 0, single buffered']
    #allocation3 [shape = 's32[1]{0}', space=sflag, size = 0x4, scoped, tag = 'scoped memory for tpu_custom_call.1']
    #allocation4 [shape = 's32[1]{0}', space=sflag, size = 0x4, scoped, tag = 'scoped memory for tpu_custom_call.1']
    #allocation5 [shape = 'u8[8192]{0}', space=vmem, size = 0x2000, scoped, tag = 'input window, operand 1, single buffered']
    #allocation6 [shape = 's32[1]{0}', space=sflag, size = 0x4, scoped, tag = 'scoped memory for tpu_custom_call.1']
    #allocation7 [shape = 'u8[4096]{0}', space=vmem, size = 0x1000, scoped, tag = 'output window, operand 0, single buffered']
    %7 = vsyncpa [#allocation3], 0
    %8 = vsyncpa [#allocation6], 0
    %9 = vsyncpa [#allocation4], 0
    // Predicated region
    $region2: #{tpu_custom_call.1} parent=1 // pred_check
      _
    $region3: #{tpu_custom_call.1} parent=1 // pred_check_branch
      %11 = sbr.rel (0) target = $region5
    $region4: #{tpu_custom_call.1} parent=1 // pred_region
      %13 = vsyncadd [#allocation3], 0
      %s14 = sshll.u32 %s0, 4
      %s15 = int_to_ptr.hbm [resolvable:$true] %s14
      %s16 = sshll.u32 [#allocation2], 4
      %s17 = int_to_ptr.vmem [resolvable:$true] %s16
      %22 = dma.hbm_to_vmem [thread:$0]  %s15, 256, %s17, [#allocation3], 128, 128, 8
    $region5: #{tpu_custom_call.1} parent=1 // pred_fallthru
      _
    // Predicated region
    $region6: #{tpu_custom_call.1} parent=1 // pred_check
      _
    $region7: #{tpu_custom_call.1} parent=1 // pred_check_branch
      %24 = sbr.rel (0) target = $region9
    $region8: #{tpu_custom_call.1} parent=1 // pred_region
      %26 = vsyncadd [#allocation6], 0
      %s27 = sshll.u32 %s1, 4
      %s28 = int_to_ptr.hbm [resolvable:$true] %s27
      %s29 = sshll.u32 [#allocation5], 4
      %s30 = int_to_ptr.vmem [resolvable:$true] %s29
      %35 = dma.hbm_to_vmem [thread:$0]  %s28, 256, %s30, [#allocation6], 128, 128, 8
    $region9: #{tpu_custom_call.1} parent=1 // pred_fallthru
      _
    // Predicated region
    $region10: #{tpu_custom_call.1} parent=1 // pred_check
      _
    $region11: #{tpu_custom_call.1} parent=1 // pred_check_branch
      %37 = sbr.rel (0) target = $region13
    $region12: #{tpu_custom_call.1} parent=1 // pred_region
      %39 = dma.done [#allocation3], 256
    $region13: #{tpu_custom_call.1} parent=1 // pred_fallthru
      _
    // Predicated region
    $region14: #{tpu_custom_call.1} parent=1 // pred_check
      _
    $region15: #{tpu_custom_call.1} parent=1 // pred_check_branch
      %41 = sbr.rel (0) target = $region17
    $region16: #{tpu_custom_call.1} parent=1 // pred_region
      %43 = dma.done [#allocation6], 256
    $region17: #{tpu_custom_call.1} parent=1 // pred_fallthru
      _
    %v44 = vld [vmem:[#allocation2] sm:$0xff]
    %v45 = vld [vmem:[#allocation2 + $0x8] sm:$0xff]
    %v46 = vld [vmem:[#allocation5] sm:$0xff]
    %v47 = vld [vmem:[#allocation5 + $0x8] sm:$0xff]
    %v48 = vmul.f32 %v46, 0.9
    %v49 = vmul.f32 %v47, 0.9
    %v50 = vadd.f32 %v48, 0.003125
    %v51 = vadd.f32 %v49, 0.003125
    %vm52 = vcmask 261120
    %v53 = vsel %vm52, %v44, -inf
    %54 = vmax.xlane.f32.xlu0 %v53
    %v55 = vpop.xlane.xlu0 %54
    %v56 = vsel %vm52, %v45, -inf
    %57 = vmax.xlane.f32.xlu0 %v56
    %v58 = vpop.xlane.xlu0 %57
    %v59 = vsub.f32 %v44, %v55
    %v60 = vsub.f32 %v45, %v58
    %v61 = vmul.f32 %v59, 1.442695
    %v62 = vpow.pop %v61
    %v63 = vmul.f32 %v60, 1.442695
    %v64 = vpow.pop %v63
    %v65 = vsel %vm52, %v62, 0.0
    %66 = vadd.xlane.f32.xlu0 %v65
    %v67 = vpop.xlane.xlu0 %66
    %v68 = vsel %vm52, %v64, 0.0
    %69 = vadd.xlane.f32.xlu0 %v68
    %v70 = vpop.xlane.xlu0 %69
    %v71 = vlog2.pop %v67
    %v72 = vmul.f32 %v71, 0.6931472
    %v73 = vlog2.pop %v70
    %v74 = vmul.f32 %v73, 0.6931472
    %v75 = vsub.f32 %v59, %v72
    %v76 = vsub.f32 %v60, %v74
    %v77 = vmul.f32 %v75, %v50
    %v78 = vmul.f32 %v76, %v51
    %v79 = vsel %vm52, %v77, 0.0
    %80 = vadd.xlane.f32.xlu0 %v79
    %v81 = vpop.xlane.xlu0 %80
    %v82 = vsel %vm52, %v78, 0.0
    %83 = vadd.xlane.f32.xlu0 %v82
    %v84 = vpop.xlane.xlu0 %83
    %v85 = vsub.f32 0.0, %v81
    %v86 = vsub.f32 0.0, %v84
    %vm87 = vcmask 7168
    %v88 = vsel %vm87, %v85, 0.0
    %v89 = vsel %vm87, %v86, 0.0
    %v90 = vadd.f32 %v88, %v89
    %91 = vadd.xlane.f32.xlu0 %v90
    %v92 = vpop.xlane.xlu0 %91
    %v93 = vrot.slane %v92, 4
    %v94 = vadd.f32 %v92, %v93
    %v95 = vrot.slane %v94, 2
    %v96 = vadd.f32 %v94, %v95
    %v97 = vrot.slane %v96, 1
    %v98 = vadd.f32 %v96, %v97
    %s99 = vtos %v98
    %v100 = vstv %s99
    %101 = vst [vmem:[#allocation7] sm:$0xff] %v100
    // Predicated region
    $region18: #{tpu_custom_call.1} parent=1 // pred_check
      _
    $region19: #{tpu_custom_call.1} parent=1 // pred_check_branch
      %103 = sbr.rel (0) target = $region21
    $region20: #{tpu_custom_call.1} parent=1 // pred_region
      %105 = vsyncadd [#allocation4], 0
      %s107 = sshll.u32 [#allocation7], 4
      %s108 = int_to_ptr.vmem [resolvable:$true] %s107
      %s109 = sshll.u32 %s2, 4
      %s110 = int_to_ptr.hbm [resolvable:$true] %s109
      %112 = dma.vmem_to_hbm [thread:$0]  %s108, 128, %s110, [#allocation4]
    $region21: #{tpu_custom_call.1} parent=1 // pred_fallthru
      _
    // Predicated region
    $region22: #{tpu_custom_call.1} parent=1 // pred_check
      _
    $region23: #{tpu_custom_call.1} parent=1 // pred_check_branch
      %114 = sbr.rel (0) target = $region25
    $region24: #{tpu_custom_call.1} parent=1 // pred_region
      %116 = dma.done [#allocation4], 128
    $region25: #{tpu_custom_call.1} parent=1 // pred_fallthru
      _
    %117 = vsyncpa [#allocation3], 1
    %118 = vsyncpa [#allocation6], 1
    %119 = vsyncpa [#allocation4], 1

</llo_original>
